<compile_context>
chip_gen: v6e
topology: v6e:2x2x1
jax: 0.10.0
libtpu: 0.0.40
codegen_flags: <defaults>
</compile_context>

<pallas_src>
import functools

import jax
import jax.numpy as jnp
from jax import lax
from jax.experimental import pallas as pl
from jax.experimental.pallas import tpu as pltpu


def _round_up(x, m):
    return ((x + m - 1) // m) * m


def _vmem_limits():
    """(scoped-vmem limit, per-step working-set budget) per chip generation."""
    cap = 64 * 1024 * 1024
    try:
        cap = int(pltpu.get_tpu_info().vmem_capacity_bytes)
    except Exception:
        pass
    if cap >= 96 * 1024 * 1024:                    # v5e / v6e: 128 MiB physical VMEM
        return 64 * 1024 * 1024, 24 * 1024 * 1024
    return 40 * 1024 * 1024, 12 * 1024 * 1024      # v7x: 64 MiB physical VMEM


_VMEM_LIMIT, _VMEM_BUDGET = _vmem_limits()
_BEST_PAD = 128          # running-best scratch padded to one full lane group
_FAR = 1e8               # coordinate for padded (fake) points -> never selected


# ------------------------------------------------------------------
# Pallas kernel 1: fused pairwise sqdist + streaming top-k (KNN).
# grid = (B, n_out_pad/tq, N_pad/tn); N axis is the innermost reduction.
# Running best distances/indices live in VMEM scratch; only knn_idx hits HBM.
# ------------------------------------------------------------------
def _knn_kernel(fp_ref, ptsT_ref, idx_ref, bestd_ref, besti_ref, *, k):
    j = pl.program_id(2)

    @pl.when(j == 0)
    def _init():
        bestd_ref[...] = jnp.full(bestd_ref.shape, jnp.inf, jnp.float32)
        besti_ref[...] = jnp.zeros(besti_ref.shape, jnp.float32)

    fp = fp_ref[0]                      # (tq, 3)
    pts = ptsT_ref[0]                   # (3, tn) -- points on the lane axis
    acc = None
    for c in range(3):                  # static unroll: lane-dense sub/mul/add
        d = fp[:, c:c + 1] - pts[c:c + 1, :]
        sq = d * d
        acc = sq if acc is None else acc + sq
    tq, tn = acc.shape

    # Global point indices for this tile, kept in f32 (exact for idx < 2^24) so
    # the selection stays on well-supported f32 lane reductions (XLU).
    lane_idx = (lax.broadcasted_iota(jnp.int32, (tq, tn), 1).astype(jnp.float32)
                + (j * tn).astype(jnp.float32))

    cand_d = jnp.concatenate([bestd_ref[...], acc], axis=-1)       # (tq, 128+tn)
    cand_i = jnp.concatenate([besti_ref[...], lane_idx], axis=-1)

    big = jnp.float32(1e9)
    new_d, new_i = [], []
    for _ in range(k):                  # k rounds: min-reduce (XLU) + mask (VPU)
        m = jnp.min(cand_d, axis=-1, keepdims=True)
        sel = jnp.min(jnp.where(cand_d == m, cand_i, big), axis=-1, keepdims=True)
        new_d.append(m)
        new_i.append(sel)
        cand_d = jnp.where(cand_i == sel, jnp.inf, cand_d)

    bestd_ref[:, 0:k] = jnp.concatenate(new_d, axis=-1)
    besti_ref[:, 0:k] = jnp.concatenate(new_i, axis=-1)

    @pl.when(j == pl.num_programs(2) - 1)
    def _finalize():
        idx_ref[0] = besti_ref[:, 0:k].astype(jnp.int32)


def knn_indices(fp_pos, p_pos, k, *, tq=None, tn=1024):
    """Fused sqdist + streaming top-k.  Returns knn_idx (B, n_out, k) int32.

    The (B, n_out, N) distance matrix never round-trips through HBM."""
    B, n_out, _ = fp_pos.shape
    _, N, _ = p_pos.shape
    assert N >= k, "need at least k points"

    if tq is None:
        tq = 512 if _VMEM_BUDGET >= 24 * 1024 * 1024 else 256
    tq = min(tq, _round_up(n_out, 8))
    tn = min(tn, _round_up(N, 128))
    n_out_pad = _round_up(n_out, tq)
    N_pad = _round_up(N, tn)
    assert N_pad < (1 << 24)            # indices held exactly as f32 in-kernel

    fp_p = jnp.pad(fp_pos, ((0, 0), (0, n_out_pad - n_out), (0, 0)))
    # Point axis on lanes; fake padded points sit far away -> never enter top-k.
    pts_T = jnp.pad(jnp.transpose(p_pos, (0, 2, 1)),
                    ((0, 0), (0, 0), (0, N_pad - N)), constant_values=_FAR)

    kernel = functools.partial(_knn_kernel, k=k)
    idx = pl.pallas_call(
        kernel,
        out_shape=jax.ShapeDtypeStruct((B, n_out_pad, k), jnp.int32),
        grid=(B, n_out_pad // tq, N_pad // tn),
        in_specs=[
            pl.BlockSpec((1, tq, 3), lambda b, i, j: (b, i, 0)),
            pl.BlockSpec((1, 3, tn), lambda b, i, j: (b, 0, j)),
        ],
        out_specs=pl.BlockSpec((1, tq, k), lambda b, i, j: (b, i, 0)),
        scratch_shapes=[
            pltpu.VMEM((tq, _BEST_PAD), jnp.float32),   # running best distances
            pltpu.VMEM((tq, _BEST_PAD), jnp.float32),   # running best indices
        ],
        compiler_params=pltpu.CompilerParams(
            dimension_semantics=("parallel", "parallel", "arbitrary"),
            vmem_limit_bytes=_VMEM_LIMIT),
    )(fp_p, pts_T)
    return idx[:, :n_out, :]


# ------------------------------------------------------------------
# Pallas kernel 2: per-point MLP -> LeakyReLU -> max over k -> MLP.
# h block (neighbor-major): (k, tm, c_in) bf16; output block (tm, d_out_pad) f32
# with d_out_pad a multiple of 128 (lane-dense stores, full MXU columns).
# ------------------------------------------------------------------
def _pool_mlp_kernel(h_ref, w_in_ref, w_out_ref, o_ref, *, k, negative_slope):
    tm = o_ref.shape[0]
    c_in = h_ref.shape[-1]
    h = h_ref[...].reshape(k * tm, c_in)                 # leading-dim collapse
    y = jnp.dot(h, w_in_ref[...], preferred_element_type=jnp.float32)   # MXU f32
    y = jnp.where(y > 0, y, negative_slope * y)          # LeakyReLU(0.01), f32 VPU
    # Unrolled k-way running maximum over contiguous sublane-aligned slices.
    m = y[0:tm]
    for j in range(1, k):
        m = jnp.maximum(m, y[j * tm:(j + 1) * tm])
    o_ref[...] = jnp.dot(m.astype(w_out_ref.dtype), w_out_ref[...],
                         preferred_element_type=jnp.float32).astype(o_ref.dtype)


def _choose_tm(M, k, c_in, d_out_pad):
    # Budget against lane/sublane-PADDED VMEM layouts (c_in/d_out rounded to 128
    # lanes; bf16 rows pack in 16-row sublane tiles -- tm kept a multiple of 16/32).
    c_in_l = _round_up(c_in, 128)
    per_row = (2 * k * c_in_l * 2          # h block, bf16, double-buffered
               + k * c_in_l * 2            # reshape copy of h
               + k * d_out_pad * 4         # f32 intermediate y
               + d_out_pad * 4             # running max, f32
               + d_out_pad * 2             # bf16 cast of the max
               + 2 * d_out_pad * 4)        # output block, f32, double-buffered
    tm = _VMEM_BUDGET // per_row
    tm = max(32, min(1024, (tm // 32) * 32))
    # Keep >=2 grid steps for moderate M so both v7x TensorCores get work.
    tm = min(tm, max(256, _round_up(pl.cdiv(M, 2), 32)))
    if M <= tm:
        tm = _round_up(max(M, 16), 16)     # bf16 min sublane tile is (16, 128)
    return int(tm)


def pool_mlp(h, w_in_pad, w_out_pad, *, tm, negative_slope=0.01):
    k, M_pad, c_in = h.shape
    d_out_pad = w_in_pad.shape[1]
    kernel = functools.partial(_pool_mlp_kernel, k=k, negative_slope=negative_slope)
    return pl.pallas_call(
        kernel,
        out_shape=jax.ShapeDtypeStruct((M_pad, d_out_pad), jnp.float32),
        grid=(M_pad // tm,),
        in_specs=[
            pl.BlockSpec((k, tm, c_in), lambda i: (0, i, 0)),
            pl.BlockSpec((c_in, d_out_pad), lambda i: (0, 0)),
            pl.BlockSpec((d_out_pad, d_out_pad), lambda i: (0, 0)),
        ],
        out_specs=pl.BlockSpec((tm, d_out_pad), lambda i: (i, 0)),
        compiler_params=pltpu.CompilerParams(
            dimension_semantics=("parallel",),
            vmem_limit_bytes=_VMEM_LIMIT),
    )(h, w_in_pad, w_out_pad)


# ------------------------------------------------------------------
# Plain-JAX glue: farthest point sampling.
# TODO(synk): move FPS into a Pallas kernel with p_pos + running min-distance
# resident in VMEM (sequential data-dependent argmax loop kept in XLA for now).
# ------------------------------------------------------------------
def sample_farthest_points(p_pos, n_out):
    # pytorch3d.ops.sample_farthest_points semantics (start from index 0).
    B, N, _ = p_pos.shape

    def per_batch(pts):
        def body(i, state):
            min_d, idxs = state
            last = pts[idxs[i - 1]]
            d = jnp.sum((pts - last) ** 2, axis=-1)
            min_d = jnp.minimum(min_d, d)
            nxt = jnp.argmax(min_d).astype(jnp.int32)
            return min_d, idxs.at[i].set(nxt)

        idxs0 = jnp.zeros((n_out,), jnp.int32)
        min_d0 = jnp.full((N,), jnp.inf, jnp.float32)
        _, idxs = lax.fori_loop(1, n_out, body, (min_d0, idxs0))
        return idxs

    idxs = jax.vmap(per_batch)(p_pos)
    fp = jnp.take_along_axis(p_pos, idxs[..., None], axis=1)
    return fp, idxs


# ------------------------------------------------------------------
# PointPool module (Pallas version).
# ------------------------------------------------------------------
class PointPoolPallas:
    def __init__(self, d_in, d_out, stride=2, k=8, key=None):
        if key is None:
            key = jax.random.PRNGKey(0)
        self.k = k
        self.stride = stride
        self.d_out = d_out
        self.d_out_pad = _round_up(d_out, 128)       # lane-dense output columns
        c_in = 3 + d_in
        k1, k2 = jax.random.split(key)
        # nn.Linear(..., bias=False): U(-1/sqrt(fan_in), 1/sqrt(fan_in)); stored
        # transposed (fan_in, fan_out) so kernels compute y = h @ W.
        b_in = 1.0 / float(c_in) ** 0.5
        b_out = 1.0 / float(d_out) ** 0.5
        self.w_in = jax.random.uniform(k1, (c_in, d_out), jnp.float32, -b_in, b_in)
        self.w_out = jax.random.uniform(k2, (d_out, d_out), jnp.float32, -b_out, b_out)
        # Zero-padded bf16 copies: padded columns stay exactly zero through
        # LeakyReLU / max / second matmul, so real outputs are unaffected.
        self.w_in_pad = (jnp.zeros((c_in, self.d_out_pad), jnp.bfloat16)
                         .at[:, :d_out].set(self.w_in.astype(jnp.bfloat16)))
        self.w_out_pad = (jnp.zeros((self.d_out_pad, self.d_out_pad), jnp.bfloat16)
                          .at[:d_out, :d_out].set(self.w_out.astype(jnp.bfloat16)))

    def __call__(self, x, p_pos):
        B, N, d_in = x.shape
        n_out = N // self.stride
        k = self.k
        c_in = 3 + d_in

        fp_p_pos, _ = sample_farthest_points(p_pos, n_out)        # (B, n_out, 3)
        knn_idx = knn_indices(fp_p_pos, p_pos, k)                 # Pallas fused KNN

        # TODO(synk): fuse this gather/concat into pool_mlp (scalar-prefetched
        # knn_idx + DMA/VMEM gather) to remove the h-sized HBM round trip.
        bidx = jnp.arange(B)[None, :, None]
        idx_t = jnp.transpose(knn_idx, (2, 0, 1))                 # (k, B, n_out)
        knn_x = x[bidx, idx_t]                                    # (k, B, n_out, d_in)
        fp_t = jnp.broadcast_to(fp_p_pos[None], (k, B, n_out, 3))
        h = jnp.concatenate([fp_t, knn_x], axis=-1)               # (k, B, n_out, c_in)

        M = B * n_out
        tm = _choose_tm(M, k, c_in, self.d_out_pad)
        M_pad = _round_up(M, tm)
        h = h.reshape(k, M, c_in).astype(jnp.bfloat16)            # bf16 MXU inputs
        h = jnp.pad(h, ((0, 0), (0, M_pad - M), (0, 0)))

        out = pool_mlp(h, self.w_in_pad, self.w_out_pad, tm=tm)   # (M_pad, d_out_pad)
        out = out[:M, :self.d_out].reshape(B, n_out, self.d_out)
        return out, fp_p_pos


if __name__ == "__main__":
    key = jax.random.PRNGKey(0)
    kx, kp, kw = jax.random.split(key, 3)
    B, N, d_in, d_out, stride, k = 2, 16, 4, 32, 2, 8

    x = jax.random.normal(kx, (B, N, d_in), jnp.float32)
    p_pos = jax.random.normal(kp, (B, N, 3), jnp.float32)

    model = PointPoolPallas(d_in, d_out, stride=stride, k=k, key=kw)
    h, fp = model(x, p_pos)
    jax.block_until_ready((h, fp))

    n_out = N // stride
    assert h.shape == (B, n_out, d_out), h.shape
    assert fp.shape == (B, n_out, 3), fp.shape
    assert jnp.all(jnp.isfinite(h)) and jnp.all(jnp.isfinite(fp))

    # Pure-JAX reference with matching bf16 matmul casts (validates the fused
    # KNN selection + pooling plumbing; only MXU vs XLA accumulation order differs).
    fp_ref, _ = sample_farthest_points(p_pos, n_out)
    d2 = jnp.sum((fp_ref[:, :, None, :] - p_pos[:, None, :, :]) ** 2, axis=-1)
    _, idx_ref = lax.top_k(-d2, k)                                 # (B, n_out, k)
    bidx = jnp.arange(B)[:, None, None]
    knn_x_ref = x[bidx, idx_ref]                                   # (B, n_out, k, d_in)
    h_ref = jnp.concatenate(
        [jnp.broadcast_to(fp_ref[:, :, None, :], (B, n_out, k, 3)), knn_x_ref],
        axis=-1).astype(jnp.bfloat16)
    y = jnp.dot(h_ref, model.w_in.astype(jnp.bfloat16),
                preferred_element_type=jnp.float32)
    y = jnp.where(y > 0, y, 0.01 * y)
    m = jnp.max(y, axis=-2)
    out_ref = jnp.dot(m.astype(jnp.bfloat16), model.w_out.astype(jnp.bfloat16),
                      preferred_element_type=jnp.float32)
    assert jnp.allclose(h, out_ref, rtol=2e-2, atol=2e-2), float(
        jnp.max(jnp.abs(h - out_ref)))
    assert jnp.allclose(fp, fp_ref)
    print("KERNEL_OK")
</pallas_src>

<mosaic_0001>
module attributes {stable_mosaic.version = 11 : i64} {
  func.func @_knn_kernel(%arg0: i32, %arg1: i32, %arg2: i32, %arg3: memref<1x8x3xf32, #tpu.memory_space<vmem>>, %arg4: memref<1x3x128xf32, #tpu.memory_space<vmem>>, %arg5: memref<1x8x8xi32, #tpu.memory_space<vmem>>, %arg6: memref<8x128xf32, #tpu.memory_space<vmem>>, %arg7: memref<8x128xf32, #tpu.memory_space<vmem>>) attributes {dimension_semantics = [#tpu.dimension_semantics<parallel>, #tpu.dimension_semantics<parallel>, #tpu.dimension_semantics<arbitrary>], iteration_bounds = array<i64: 2, 1, 1>, scalar_prefetch = 0 : i64, scratch_operands = 2 : i64, tpu.core_type = #tpu.core_type<tc>, window_params = [{transform_indices = @transform_0, window_bounds = array<i64: 1, 8, 3>}, {transform_indices = @transform_1, window_bounds = array<i64: 1, 3, 128>}, {transform_indices = @transform_2, window_bounds = array<i64: 1, 8, 8>}]} {
    %c0_i32 = arith.constant 0 : i32
    %0 = arith.cmpi eq, %arg2, %c0_i32 : i32
    %1 = arith.extui %0 : i1 to i32
    %c0_i32_0 = arith.constant 0 : i32
    %2 = arith.cmpi ne, %1, %c0_i32_0 : i32
    scf.if %2 {
      %cst_46 = arith.constant 0x7F800000 : f32
      %136 = vector.broadcast %cst_46 : f32 to vector<8x128xf32>
      %c0_47 = arith.constant 0 : index
      %c0_48 = arith.constant 0 : index
      %137 = vector.load %arg6[%c0_47, %c0_48] : memref<8x128xf32, #tpu.memory_space<vmem>>, vector<8x128xf32>
      tpu.vector_store %arg6[%c0_47, %c0_48], %136 {strides = array<i32>} : memref<8x128xf32, #tpu.memory_space<vmem>>, vector<8x128xf32>,
      %cst_49 = arith.constant 0.000000e+00 : f32
      %138 = vector.broadcast %cst_49 : f32 to vector<8x128xf32>
      %c0_50 = arith.constant 0 : index
      %c0_51 = arith.constant 0 : index
      %139 = vector.load %arg7[%c0_50, %c0_51] : memref<8x128xf32, #tpu.memory_space<vmem>>, vector<8x128xf32>
      tpu.vector_store %arg7[%c0_50, %c0_51], %138 {strides = array<i32>} : memref<8x128xf32, #tpu.memory_space<vmem>>, vector<8x128xf32>,
    } else {
    }
    %c0 = arith.constant 0 : index
    %c0_1 = arith.constant 0 : index
    %c0_2 = arith.constant 0 : index
    %3 = vector.load %arg3[%c0, %c0_1, %c0_2] : memref<1x8x3xf32, #tpu.memory_space<vmem>>, vector<1x8x3xf32>
    %4 = vector.shape_cast %3 : vector<1x8x3xf32> to vector<8x3xf32>
    %c0_3 = arith.constant 0 : index
    %c0_4 = arith.constant 0 : index
    %c0_5 = arith.constant 0 : index
    %5 = vector.load %arg4[%c0_3, %c0_4, %c0_5] : memref<1x3x128xf32, #tpu.memory_space<vmem>>, vector<1x3x128xf32>
    %6 = vector.shape_cast %5 : vector<1x3x128xf32> to vector<3x128xf32>
    %7 = vector.extract_strided_slice %4 {offsets = [0, 0], sizes = [8, 1], strides = [1, 1]} : vector<8x3xf32> to vector<8x1xf32>
    %8 = vector.extract_strided_slice %6 {offsets = [0, 0], sizes = [1, 128], strides = [1, 1]} : vector<3x128xf32> to vector<1x128xf32>
    %9 = vector.broadcast %7 : vector<8x1xf32> to vector<8x128xf32>
    %10 = vector.broadcast %8 : vector<1x128xf32> to vector<8x128xf32>
    %11 = arith.subf %9, %10 : vector<8x128xf32>
    %12 = arith.mulf %11, %11 : vector<8x128xf32>
    %13 = vector.extract_strided_slice %4 {offsets = [0, 1], sizes = [8, 1], strides = [1, 1]} : vector<8x3xf32> to vector<8x1xf32>
    %14 = vector.extract_strided_slice %6 {offsets = [1, 0], sizes = [1, 128], strides = [1, 1]} : vector<3x128xf32> to vector<1x128xf32>
    %15 = vector.broadcast %13 : vector<8x1xf32> to vector<8x128xf32>
    %16 = vector.broadcast %14 : vector<1x128xf32> to vector<8x128xf32>
    %17 = arith.subf %15, %16 : vector<8x128xf32>
    %18 = arith.mulf %17, %17 : vector<8x128xf32>
    %19 = arith.addf %12, %18 : vector<8x128xf32>
    %20 = vector.extract_strided_slice %4 {offsets = [0, 2], sizes = [8, 1], strides = [1, 1]} : vector<8x3xf32> to vector<8x1xf32>
    %21 = vector.extract_strided_slice %6 {offsets = [2, 0], sizes = [1, 128], strides = [1, 1]} : vector<3x128xf32> to vector<1x128xf32>
    %22 = vector.broadcast %20 : vector<8x1xf32> to vector<8x128xf32>
    %23 = vector.broadcast %21 : vector<1x128xf32> to vector<8x128xf32>
    %24 = arith.subf %22, %23 : vector<8x128xf32>
    %25 = arith.mulf %24, %24 : vector<8x128xf32>
    %26 = arith.addf %19, %25 : vector<8x128xf32>
    %27 = tpu.iota {dimensions = array<i32: 1>} : vector<8x128xi32>
    %28 = arith.sitofp %27 : vector<8x128xi32> to vector<8x128xf32>
    %c128_i32 = arith.constant 128 : i32
    %29 = arith.muli %arg2, %c128_i32 : i32
    %30 = arith.sitofp %29 : i32 to f32
    %31 = vector.broadcast %30 : f32 to vector<8x128xf32>
    %32 = arith.addf %28, %31 : vector<8x128xf32>
    %c0_6 = arith.constant 0 : index
    %c0_7 = arith.constant 0 : index
    %33 = vector.load %arg6[%c0_6, %c0_7] : memref<8x128xf32, #tpu.memory_space<vmem>>, vector<8x128xf32>
    %34 = tpu.concatenate %33, %26 in 1 : vector<8x128xf32>, vector<8x128xf32> -> vector<8x256xf32>
    %c0_8 = arith.constant 0 : index
    %c0_9 = arith.constant 0 : index
    %35 = vector.load %arg7[%c0_8, %c0_9] : memref<8x128xf32, #tpu.memory_space<vmem>>, vector<8x128xf32>
    %36 = tpu.concatenate %35, %32 in 1 : vector<8x128xf32>, vector<8x128xf32> -> vector<8x256xf32>
    %cst = arith.constant dense<0x7F800000> : vector<8xf32>
    %37 = vector.multi_reduction <minimumf>, %34, %cst [1] : vector<8x256xf32> to vector<8xf32>
    %38 = vector.shape_cast %37 : vector<8xf32> to vector<8x1xf32>
    %39 = vector.broadcast %38 : vector<8x1xf32> to vector<8x256xf32>
    %40 = arith.cmpf oeq, %34, %39 : vector<8x256xf32>
    %cst_10 = arith.constant 1.000000e+09 : f32
    %41 = vector.broadcast %cst_10 : f32 to vector<8x256xf32>
    %42 = arith.select %40, %36, %41 : vector<8x256xi1>, vector<8x256xf32>
    %cst_11 = arith.constant dense<0x7F800000> : vector<8xf32>
    %43 = vector.multi_reduction <minimumf>, %42, %cst_11 [1] : vector<8x256xf32> to vector<8xf32>
    %44 = vector.shape_cast %43 : vector<8xf32> to vector<8x1xf32>
    %45 = vector.broadcast %44 : vector<8x1xf32> to vector<8x256xf32>
    %46 = arith.cmpf oeq, %36, %45 : vector<8x256xf32>
    %cst_12 = arith.constant 0x7F800000 : f32
    %47 = vector.broadcast %cst_12 : f32 to vector<8x256xf32>
    %48 = arith.select %46, %47, %34 : vector<8x256xi1>, vector<8x256xf32>
    %cst_13 = arith.constant dense<0x7F800000> : vector<8xf32>
    %49 = vector.multi_reduction <minimumf>, %48, %cst_13 [1] : vector<8x256xf32> to vector<8xf32>
    %50 = vector.shape_cast %49 : vector<8xf32> to vector<8x1xf32>
    %51 = vector.broadcast %50 : vector<8x1xf32> to vector<8x256xf32>
    %52 = arith.cmpf oeq, %48, %51 : vector<8x256xf32>
    %cst_14 = arith.constant 1.000000e+09 : f32
    %53 = vector.broadcast %cst_14 : f32 to vector<8x256xf32>
    %54 = arith.select %52, %36, %53 : vector<8x256xi1>, vector<8x256xf32>
    %cst_15 = arith.constant dense<0x7F800000> : vector<8xf32>
    %55 = vector.multi_reduction <minimumf>, %54, %cst_15 [1] : vector<8x256xf32> to vector<8xf32>
    %56 = vector.shape_cast %55 : vector<8xf32> to vector<8x1xf32>
    %57 = vector.broadcast %56 : vector<8x1xf32> to vector<8x256xf32>
    %58 = arith.cmpf oeq, %36, %57 : vector<8x256xf32>
    %cst_16 = arith.constant 0x7F800000 : f32
    %59 = vector.broadcast %cst_16 : f32 to vector<8x256xf32>
    %60 = arith.select %58, %59, %48 : vector<8x256xi1>, vector<8x256xf32>
    %cst_17 = arith.constant dense<0x7F800000> : vector<8xf32>
    %61 = vector.multi_reduction <minimumf>, %60, %cst_17 [1] : vector<8x256xf32> to vector<8xf32>
    %62 = vector.shape_cast %61 : vector<8xf32> to vector<8x1xf32>
    %63 = vector.broadcast %62 : vector<8x1xf32> to vector<8x256xf32>
    %64 = arith.cmpf oeq, %60, %63 : vector<8x256xf32>
    %cst_18 = arith.constant 1.000000e+09 : f32
    %65 = vector.broadcast %cst_18 : f32 to vector<8x256xf32>
    %66 = arith.select %64, %36, %65 : vector<8x256xi1>, vector<8x256xf32>
    %cst_19 = arith.constant dense<0x7F800000> : vector<8xf32>
    %67 = vector.multi_reduction <minimumf>, %66, %cst_19 [1] : vector<8x256xf32> to vector<8xf32>
    %68 = vector.shape_cast %67 : vector<8xf32> to vector<8x1xf32>
    %69 = vector.broadcast %68 : vector<8x1xf32> to vector<8x256xf32>
    %70 = arith.cmpf oeq, %36, %69 : vector<8x256xf32>
    %cst_20 = arith.constant 0x7F800000 : f32
    %71 = vector.broadcast %cst_20 : f32 to vector<8x256xf32>
    %72 = arith.select %70, %71, %60 : vector<8x256xi1>, vector<8x256xf32>
    %cst_21 = arith.constant dense<0x7F800000> : vector<8xf32>
    %73 = vector.multi_reduction <minimumf>, %72, %cst_21 [1] : vector<8x256xf32> to vector<8xf32>
    %74 = vector.shape_cast %73 : vector<8xf32> to vector<8x1xf32>
    %75 = vector.broadcast %74 : vector<8x1xf32> to vector<8x256xf32>
    %76 = arith.cmpf oeq, %72, %75 : vector<8x256xf32>
    %cst_22 = arith.constant 1.000000e+09 : f32
    %77 = vector.broadcast %cst_22 : f32 to vector<8x256xf32>
    %78 = arith.select %76, %36, %77 : vector<8x256xi1>, vector<8x256xf32>
    %cst_23 = arith.constant dense<0x7F800000> : vector<8xf32>
    %79 = vector.multi_reduction <minimumf>, %78, %cst_23 [1] : vector<8x256xf32> to vector<8xf32>
    %80 = vector.shape_cast %79 : vector<8xf32> to vector<8x1xf32>
    %81 = vector.broadcast %80 : vector<8x1xf32> to vector<8x256xf32>
    %82 = arith.cmpf oeq, %36, %81 : vector<8x256xf32>
    %cst_24 = arith.constant 0x7F800000 : f32
    %83 = vector.broadcast %cst_24 : f32 to vector<8x256xf32>
    %84 = arith.select %82, %83, %72 : vector<8x256xi1>, vector<8x256xf32>
    %cst_25 = arith.constant dense<0x7F800000> : vector<8xf32>
    %85 = vector.multi_reduction <minimumf>, %84, %cst_25 [1] : vector<8x256xf32> to vector<8xf32>
    %86 = vector.shape_cast %85 : vector<8xf32> to vector<8x1xf32>
    %87 = vector.broadcast %86 : vector<8x1xf32> to vector<8x256xf32>
    %88 = arith.cmpf oeq, %84, %87 : vector<8x256xf32>
    %cst_26 = arith.constant 1.000000e+09 : f32
    %89 = vector.broadcast %cst_26 : f32 to vector<8x256xf32>
    %90 = arith.select %88, %36, %89 : vector<8x256xi1>, vector<8x256xf32>
    %cst_27 = arith.constant dense<0x7F800000> : vector<8xf32>
    %91 = vector.multi_reduction <minimumf>, %90, %cst_27 [1] : vector<8x256xf32> to vector<8xf32>
    %92 = vector.shape_cast %91 : vector<8xf32> to vector<8x1xf32>
    %93 = vector.broadcast %92 : vector<8x1xf32> to vector<8x256xf32>
    %94 = arith.cmpf oeq, %36, %93 : vector<8x256xf32>
    %cst_28 = arith.constant 0x7F800000 : f32
    %95 = vector.broadcast %cst_28 : f32 to vector<8x256xf32>
    %96 = arith.select %94, %95, %84 : vector<8x256xi1>, vector<8x256xf32>
    %cst_29 = arith.constant dense<0x7F800000> : vector<8xf32>
    %97 = vector.multi_reduction <minimumf>, %96, %cst_29 [1] : vector<8x256xf32> to vector<8xf32>
    %98 = vector.shape_cast %97 : vector<8xf32> to vector<8x1xf32>
    %99 = vector.broadcast %98 : vector<8x1xf32> to vector<8x256xf32>
    %100 = arith.cmpf oeq, %96, %99 : vector<8x256xf32>
    %cst_30 = arith.constant 1.000000e+09 : f32
    %101 = vector.broadcast %cst_30 : f32 to vector<8x256xf32>
    %102 = arith.select %100, %36, %101 : vector<8x256xi1>, vector<8x256xf32>
    %cst_31 = arith.constant dense<0x7F800000> : vector<8xf32>
    %103 = vector.multi_reduction <minimumf>, %102, %cst_31 [1] : vector<8x256xf32> to vector<8xf32>
    %104 = vector.shape_cast %103 : vector<8xf32> to vector<8x1xf32>
    %105 = vector.broadcast %104 : vector<8x1xf32> to vector<8x256xf32>
    %106 = arith.cmpf oeq, %36, %105 : vector<8x256xf32>
    %cst_32 = arith.constant 0x7F800000 : f32
    %107 = vector.broadcast %cst_32 : f32 to vector<8x256xf32>
    %108 = arith.select %106, %107, %96 : vector<8x256xi1>, vector<8x256xf32>
    %cst_33 = arith.constant dense<0x7F800000> : vector<8xf32>
    %109 = vector.multi_reduction <minimumf>, %108, %cst_33 [1] : vector<8x256xf32> to vector<8xf32>
    %110 = vector.shape_cast %109 : vector<8xf32> to vector<8x1xf32>
    %111 = vector.broadcast %110 : vector<8x1xf32> to vector<8x256xf32>
    %112 = arith.cmpf oeq, %108, %111 : vector<8x256xf32>
    %cst_34 = arith.constant 1.000000e+09 : f32
    %113 = vector.broadcast %cst_34 : f32 to vector<8x256xf32>
    %114 = arith.select %112, %36, %113 : vector<8x256xi1>, vector<8x256xf32>
    %cst_35 = arith.constant dense<0x7F800000> : vector<8xf32>
    %115 = vector.multi_reduction <minimumf>, %114, %cst_35 [1] : vector<8x256xf32> to vector<8xf32>
    %116 = vector.shape_cast %115 : vector<8xf32> to vector<8x1xf32>
    %117 = vector.broadcast %116 : vector<8x1xf32> to vector<8x256xf32>
    %118 = arith.cmpf oeq, %36, %117 : vector<8x256xf32>
    %cst_36 = arith.constant 0x7F800000 : f32
    %119 = vector.broadcast %cst_36 : f32 to vector<8x256xf32>
    %120 = arith.select %118, %119, %108 : vector<8x256xi1>, vector<8x256xf32>
    %cst_37 = arith.constant dense<0x7F800000> : vector<8xf32>
    %121 = vector.multi_reduction <minimumf>, %120, %cst_37 [1] : vector<8x256xf32> to vector<8xf32>
    %122 = vector.shape_cast %121 : vector<8xf32> to vector<8x1xf32>
    %123 = vector.broadcast %122 : vector<8x1xf32> to vector<8x256xf32>
    %124 = arith.cmpf oeq, %120, %123 : vector<8x256xf32>
    %cst_38 = arith.constant 1.000000e+09 : f32
    %125 = vector.broadcast %cst_38 : f32 to vector<8x256xf32>
    %126 = arith.select %124, %36, %125 : vector<8x256xi1>, vector<8x256xf32>
    %cst_39 = arith.constant dense<0x7F800000> : vector<8xf32>
    %127 = vector.multi_reduction <minimumf>, %126, %cst_39 [1] : vector<8x256xf32> to vector<8xf32>
    %128 = vector.shape_cast %127 : vector<8xf32> to vector<8x1xf32>
    %129 = tpu.concatenate %38, %50, %62, %74, %86, %98, %110, %122 in 1 : vector<8x1xf32>, vector<8x1xf32>, vector<8x1xf32>, vector<8x1xf32>, vector<8x1xf32>, vector<8x1xf32>, vector<8x1xf32>, vector<8x1xf32> -> vector<8x8xf32>
    %c0_40 = arith.constant 0 : index
    %c0_41 = arith.constant 0 : index
    %130 = vector.load %arg6[%c0_40, %c0_41] : memref<8x128xf32, #tpu.memory_space<vmem>>, vector<8x8xf32>
    tpu.vector_store %arg6[%c0_40, %c0_41], %129 {strides = array<i32>} : memref<8x128xf32, #tpu.memory_space<vmem>>, vector<8x8xf32>,
    %131 = tpu.concatenate %44, %56, %68, %80, %92, %104, %116, %128 in 1 : vector<8x1xf32>, vector<8x1xf32>, vector<8x1xf32>, vector<8x1xf32>, vector<8x1xf32>, vector<8x1xf32>, vector<8x1xf32>, vector<8x1xf32> -> vector<8x8xf32>
    %c0_42 = arith.constant 0 : index
    %c0_43 = arith.constant 0 : index
    %132 = vector.load %arg7[%c0_42, %c0_43] : memref<8x128xf32, #tpu.memory_space<vmem>>, vector<8x8xf32>
    tpu.vector_store %arg7[%c0_42, %c0_43], %131 {strides = array<i32>} : memref<8x128xf32, #tpu.memory_space<vmem>>, vector<8x8xf32>,
    %c0_i32_44 = arith.constant 0 : i32
    %133 = arith.cmpi eq, %arg2, %c0_i32_44 : i32
    %134 = arith.extui %133 : i1 to i32
    %c0_i32_45 = arith.constant 0 : i32
    %135 = arith.cmpi ne, %134, %c0_i32_45 : i32
    scf.if %135 {
      %c0_46 = arith.constant 0 : index
      %c0_47 = arith.constant 0 : index
      %136 = vector.load %arg7[%c0_46, %c0_47] : memref<8x128xf32, #tpu.memory_space<vmem>>, vector<8x8xf32>
      %137 = arith.fptosi %136 : vector<8x8xf32> to vector<8x8xi32>
      %c0_48 = arith.constant 0 : index
      %c0_49 = arith.constant 0 : index
      %c0_50 = arith.constant 0 : index
      %138 = vector.load %arg5[%c0_48, %c0_49, %c0_50] : memref<1x8x8xi32, #tpu.memory_space<vmem>>, vector<1x8x8xi32>
      %139 = vector.shape_cast %138 : vector<1x8x8xi32> to vector<8x8xi32>
      %140 = vector.shape_cast %137 : vector<8x8xi32> to vector<1x8x8xi32>
      tpu.vector_store %arg5[%c0_48, %c0_49, %c0_50], %140 {strides = array<i32>} : memref<1x8x8xi32, #tpu.memory_space<vmem>>, vector<1x8x8xi32>,
    } else {
    }
    return
  }
  func.func @transform_0(%arg0: i32, %arg1: i32, %arg2: i32) -> (i32, i32, i32) {
    %c0_i32 = arith.constant 0 : i32
    %c0_i32_0 = arith.constant 0 : i32
    return %arg0, %arg1, %c0_i32 : i32, i32, i32
  }
  func.func @transform_1(%arg0: i32, %arg1: i32, %arg2: i32) -> (i32, i32, i32) {
    %c0_i32 = arith.constant 0 : i32
    %c0_i32_0 = arith.constant 0 : i32
    return %arg0, %c0_i32, %arg2 : i32, i32, i32
  }
  func.func @transform_2(%arg0: i32, %arg1: i32, %arg2: i32) -> (i32, i32, i32) {
    %c0_i32 = arith.constant 0 : i32
    %c0_i32_0 = arith.constant 0 : i32
    return %arg0, %arg1, %c0_i32 : i32, i32, i32
  }
}

</mosaic_0001>

<llo_original>
// kernel: tpu_custom_call.1
$region0: #{tpu_custom_call.1}
  #allocation0 [shape = 'u32[]', space=smem, size = 0x4, offset = 0x4, fixed_abs, tag = 'smem constant byte address 0x4 - core index']
  #allocation1 [shape = 'u32[144,128]{1,0:T(1,128)}', space=vmem, size = 0x12000, scoped, tag = 'internal scratch']
  #allocation2 [shape = 'f32[8,128]{1,0:T(8,128)}', space=vmem, size = 0x1000, scoped, tag = 'scratch operand']
  #allocation3 [shape = 'f32[8,128]{1,0:T(8,128)}', space=vmem, size = 0x1000, scoped, tag = 'scratch operand']
  %s0 = inlined_call_operand.vmem [shape: f32[2,8,3], index: 0, kind: input, shape index: {}]
  %s1 = inlined_call_operand.vmem [shape: f32[2,3,128], index: 1, kind: input, shape index: {}]
  %s2 = inlined_call_operand.hbm [shape: s32[2,8,8], index: 2, kind: output, shape index: {}]
  %s3 = sld [smem:[#allocation0]]
  $region49: #{tpu_custom_call.1} parent=0
    _
  %s5 = ssub.s32 1, %s3
  %s6 = scalar_select 0, %s5, %s3
  $region1: #{tpu_custom_call.1} parent=0
    #allocation4 [shape = 'u8[8192]{0}', space=vmem, size = 0x2000, scoped, tag = 'output window, operand 0']
    #allocation5 [shape = 's32[2]{0}', space=sflag, size = 0x8, scoped, tag = 'scoped memory for tpu_custom_call.1']
    %7 = vsyncpa [#allocation5], 0
    %s8 = scalar_lea.sflag [#allocation5], 1
    %9 = vsyncpa %s8, 0
    loop: start=0, step=1, limit=4
    $region2: #{tpu_custom_call.1} parent=1 // loop_pre_header
      _
    $region3: #{tpu_custom_call.1} parent=1 // loop_header
      %s11 = sphi 0, %s15
      %p12 = scmp.ge.s32.totalorder %s11, 4
      %s18 = sphi 0, %s37
      %s19 = sphi 0, %s33
      %s20 = sphi 0, %s29
      %s21 = sphi 0, %s18
      %s22 = sphi 0, %s19
      %s23 = sphi 0, %s20
      %s24 = sphi 0, %s21
      %s25 = sphi 0, %s22
      %s26 = sphi 0, %s23
      %s42 = sphi 0, %s44
      %s45 = sphi 0, %s42
      %s46 = sphi 0, %s45
      %s62 = sphi 0, %s46
      %s70 = sphi 0, %s72
      %s73 = sphi 0, %s70
      %s74 = sphi 0, %s73
      %s90 = sphi 0, %s74
      %s98 = sphi 0, %s100
      %s101 = sphi 0, %s98
      %s102 = sphi 0, %s101
      %s118 = sphi 0, %s102
    $region4: #{tpu_custom_call.1} parent=1 // loop_header_branch
      %14 = sbr.rel (%p12) target = $region8
    $region5: #{tpu_custom_call.1} parent=1 // loop_body
      %s16 = ssub.s32 %s11, 1
      %s17 = ssub.s32 %s11, 2
      %s27 = sadd.s32 1, %s20
      %p28 = scmp.ge.s32.totalorder %s27, 1
      %s29 = scalar_select %p28, 0, %s27
      %s30 = sadd.s32 1, %s19
      %s31 = scalar_select %p28, %s30, %s19
      %p32 = scmp.ge.s32.totalorder %s31, 1
      %s33 = scalar_select %p32, 0, %s31
      %s34 = sadd.s32 1, %s18
      %s35 = scalar_select %p32, %s34, %s18
      %p36 = scmp.ge.s32.totalorder %s35, 2
      %s37 = scalar_select %p36, 0, %s35
      %s38 = ssub.s32 %s18, %s37
      %s39 = ssub.s32 %s19, %s33
      %s40 = sor.u32 %s38, %s39
      %p41 = scmp.eq.s32.totalorder %s40, 0
      %s43 = sadd.s32 %s42, 1
      %s44 = scalar_select %p41, %s42, %s43
      %p47 = pneg %p41
      %p48 = scmp.eq.s32.totalorder %s11, 1
      %p49 = por %p47, %p48
      %p50 = scmp.ne.s32.totalorder %s42, %s45
      %p51 = scmp.eq.s32.totalorder %s11, 0
      %p52 = por %p50, %p51
      %p53 = scmp.ne.s32.totalorder %s42, %s45
      %p54 = scmp.eq.s32.totalorder %s16, 1
      %p55 = por %p53, %p54
      %p56 = scmp.ne.s32.totalorder %s45, %s46
      %p57 = scmp.eq.s32.totalorder %s16, 0
      %p58 = por %p56, %p57
      %p59 = scmp.ne.s32.totalorder %s45, %s46
      %p60 = scmp.eq.s32.totalorder %s17, 1
      %p61 = por %p59, %p60
      %p63 = scmp.ne.s32.totalorder %s46, %s62
      %p64 = scmp.eq.s32.totalorder %s17, 0
      %p65 = por %p63, %p64
      %s66 = ssub.s32 %s18, %s37
      %s67 = ssub.s32 %s20, %s29
      %s68 = sor.u32 %s66, %s67
      %p69 = scmp.eq.s32.totalorder %s68, 0
      %s71 = sadd.s32 %s70, 1
      %s72 = scalar_select %p69, %s70, %s71
      %p75 = pneg %p69
      %p76 = scmp.eq.s32.totalorder %s11, 1
      %p77 = por %p75, %p76
      %p78 = scmp.ne.s32.totalorder %s70, %s73
      %p79 = scmp.eq.s32.totalorder %s11, 0
      %p80 = por %p78, %p79
      %p81 = scmp.ne.s32.totalorder %s70, %s73
      %p82 = scmp.eq.s32.totalorder %s16, 1
      %p83 = por %p81, %p82
      %p84 = scmp.ne.s32.totalorder %s73, %s74
      %p85 = scmp.eq.s32.totalorder %s16, 0
      %p86 = por %p84, %p85
      %p87 = scmp.ne.s32.totalorder %s73, %s74
      %p88 = scmp.eq.s32.totalorder %s17, 1
      %p89 = por %p87, %p88
      %p91 = scmp.ne.s32.totalorder %s74, %s90
      %p92 = scmp.eq.s32.totalorder %s17, 0
      %p93 = por %p91, %p92
      %s94 = ssub.s32 %s18, %s37
      %s95 = ssub.s32 %s19, %s33
      %s96 = sor.u32 %s94, %s95
      %p97 = scmp.eq.s32.totalorder %s96, 0
      %s99 = sadd.s32 %s98, 1
      %s100 = scalar_select %p97, %s98, %s99
      %p103 = pneg %p97
      %p104 = scmp.eq.s32.totalorder %s11, 1
      %p105 = por %p103, %p104
      %p106 = scmp.ne.s32.totalorder %s98, %s101
      %p107 = scmp.eq.s32.totalorder %s11, 0
      %p108 = por %p106, %p107
      %p109 = scmp.ne.s32.totalorder %s98, %s101
      %p110 = scmp.eq.s32.totalorder %s16, 1
      %p111 = por %p109, %p110
      %p112 = scmp.ne.s32.totalorder %s101, %s102
      %p113 = scmp.eq.s32.totalorder %s16, 0
      %p114 = por %p112, %p113
      %p115 = scmp.ne.s32.totalorder %s101, %s102
      %p116 = scmp.eq.s32.totalorder %s17, 1
      %p117 = por %p115, %p116
      %p119 = scmp.ne.s32.totalorder %s102, %s118
      %p120 = scmp.eq.s32.totalorder %s17, 0
      %p121 = por %p119, %p120
      %p122 = scmp.le.s32.totalorder 1, %s11
      %p123 = scmp.lt.s32.totalorder %s11, 3
      %p124 = pnand %p122, %p123
      %p125 = pneg %p124
      // Predicated region
      $region9: #{tpu_custom_call.1} parent=5 // pred_check
        _
      $region10: #{tpu_custom_call.1} parent=5 // pred_check_branch
        %127 = sbr.rel (%p124) target = $region12
      $region11: #{tpu_custom_call.1} parent=5 // pred_region
        %s128 = ssub.s32 %s11, 1
      $region12: #{tpu_custom_call.1} parent=5 // pred_fallthru
        _
      %p129 = scmp.lt.s32.totalorder %s11, 2
      // Predicated region
      $region13: #{tpu_custom_call.1} parent=5 // pred_check
        %p130 = pneg %p129
      $region14: #{tpu_custom_call.1} parent=5 // pred_check_branch
        %132 = sbr.rel (%p130) target = $region16
      $region15: #{tpu_custom_call.1} parent=5 // pred_region
        // Predicated region
        $region17: #{tpu_custom_call.1} parent=15 // pred_check
          %p133 = pneg %p52
        $region18: #{tpu_custom_call.1} parent=15 // pred_check_branch
          %135 = sbr.rel (%p133) target = $region20
        $region19: #{tpu_custom_call.1} parent=15 // pred_region
          %p136 = scmp.lt.s32.totalorder %s18, 1
          %s137 = scalar_select %p136, %s18, 1
          %p138 = scmp.lt.s32.totalorder %s19, 0
          %s139 = scalar_select %p138, %s19, 0
          %s140 = sadd.s32 %s139, %s137
          %s141 = smul.addr %s140, 8
          %s142 = scalar_lea.vmem %s0, %s141
        $region20: #{tpu_custom_call.1} parent=15 // pred_fallthru
          _
        // Predicated region
        $region21: #{tpu_custom_call.1} parent=15 // pred_check
          %p143 = pneg %p80
        $region22: #{tpu_custom_call.1} parent=15 // pred_check_branch
          %145 = sbr.rel (%p143) target = $region24
        $region23: #{tpu_custom_call.1} parent=15 // pred_region
          %p146 = scmp.lt.s32.totalorder %s18, 1
          %s147 = scalar_select %p146, %s18, 1
          %p148 = scmp.lt.s32.totalorder %s20, 0
          %s149 = scalar_select %p148, %s20, 0
          %s150 = sadd.s32 %s149, %s147
          %s151 = smul.addr %s150, 4
          %s152 = scalar_lea.vmem %s1, %s151
        $region24: #{tpu_custom_call.1} parent=15 // pred_fallthru
          _
      $region16: #{tpu_custom_call.1} parent=5 // pred_fallthru
        _
      %p153 = scmp.le.s32.totalorder 1, %s11
      %p154 = scmp.lt.s32.totalorder %s11, 3
      %p155 = pnand %p153, %p154
      %p156 = pneg %p155
      // Predicated region
      $region25: #{tpu_custom_call.1} parent=5 // pred_check
        _
      $region26: #{tpu_custom_call.1} parent=5 // pred_check_branch
        %158 = sbr.rel (%p155) target = $region28
      $region27: #{tpu_custom_call.1} parent=5 // pred_region
        %s159 = ssub.s32 %s11, 1
        %p160 = scmp.lt.s32.totalorder %s21, 1
        %s161 = scalar_select %p160, %s21, 1
        %p162 = scmp.lt.s32.totalorder %s22, 0
        %s163 = scalar_select %p162, %s22, 0
        %s164 = sadd.s32 %s163, %s161
        %s165 = smul.addr %s164, 8
        %s166 = scalar_lea.vmem %s0, %s165
        %p167 = pneg %p58
        %p168 = pneg %p55
        %p169 = scmp.lt.s32.totalorder %s21, 1
        %s170 = scalar_select %p169, %s21, 1
        %p171 = scmp.lt.s32.totalorder %s23, 0
        %s172 = scalar_select %p171, %s23, 0
        %s173 = sadd.s32 %s172, %s170
        %s174 = smul.addr %s173, 4
        %s175 = scalar_lea.vmem %s1, %s174
        %p176 = pneg %p86
        %p177 = pneg %p83
        %p178 = pneg %p114
        %p179 = pneg %p111
        %s180 = sand.u32 %s101, 1
        %s181 = scalar_lea.sflag [#allocation5], %s180
        %s182 = sand.u32 %s101, 1
        %s183 = smul.addr %s182, 8
        %s184 = scalar_lea.vmem [#allocation4], %s183
        %p185 = scmp.lt.s32.totalorder %s21, 1
        %s186 = scalar_select %p185, %s21, 1
        %p187 = scmp.lt.s32.totalorder %s22, 0
        %s188 = scalar_select %p187, %s22, 0
        %s189 = sadd.s32 %s188, %s186
        %s190 = smul.addr %s189, 8
        %s191 = scalar_lea.vmem %s0, %s190
        %p192 = scmp.lt.s32.totalorder %s21, 1
        %s193 = scalar_select %p192, %s21, 1
        %p194 = scmp.lt.s32.totalorder %s23, 0
        %s195 = scalar_select %p194, %s23, 0
        %s196 = sadd.s32 %s195, %s193
        %s197 = smul.addr %s196, 4
        %s198 = scalar_lea.vmem %s1, %s197
        %p199 = scmp.eq.s32.totalorder %s23, 0
        // Predicated region
        $region29: #{tpu_custom_call.1} parent=27 // pred_check
          %p200 = pneg %p199
        $region30: #{tpu_custom_call.1} parent=27 // pred_check_branch
          %202 = sbr.rel (%p200) target = $region32
        $region31: #{tpu_custom_call.1} parent=27 // pred_region
          %203 = vst [vmem:[#allocation2] sm:$0xff] inf
          %204 = vst [vmem:[#allocation3] sm:$0xff] 0.0
        $region32: #{tpu_custom_call.1} parent=27 // pred_fallthru
          _
        %v205 = vld [vmem:[%s191] sm:$0xff]
        %v206 = vld [vmem:[%s198] sm:$0x7]
        %208 = vset.pattern.permute.xlu0 0
        %209 = vperm.xlu0 %208, %v205
        %v210 = vpop.permute.xlu0 %209
        %v212 = vlaneseq
        %v213 = vshrl.u32 %v212, 7
        %v214 = vsub.s32 0, %v213
        %v215 = vrot.slane %v206, %v214
        %v216 = vsub.f32 %v210, %v215
        %v217 = vmul.f32 %v216, %v216
        %218 = vset.pattern.permute.xlu0 1
        %219 = vperm.xlu0 %218, %v205
        %v220 = vpop.permute.xlu0 %219
        %v222 = vlaneseq
        %v223 = vshrl.u32 %v222, 7
        %v224 = vsub.s32 1, %v223
        %v225 = vrot.slane %v206, %v224
        %v226 = vsub.f32 %v220, %v225
        %v227 = vmul.f32 %v226, %v226
        %v228 = vadd.f32 %v217, %v227
        %229 = vset.pattern.permute.xlu0 2
        %230 = vperm.xlu0 %229, %v205
        %v231 = vpop.permute.xlu0 %230
        %v233 = vlaneseq
        %v234 = vshrl.u32 %v233, 7
        %v235 = vsub.s32 2, %v234
        %v236 = vrot.slane %v206, %v235
        %v237 = vsub.f32 %v231, %v236
        %v238 = vmul.f32 %v237, %v237
        %v239 = vadd.f32 %v228, %v238
        %v240 = vlaneseq
        %v241 = vand.u32 %v240, 127
        %v242 = vcvt.s32.f32 %v241
        %s243 = smul.u32 %s23, 128
        %s244 = scvt.s32.f32 %s243
        %v245 = vstv %s244
        %v246 = vadd.f32 %v242, %v245
        %v247 = vld [vmem:[#allocation2] sm:$0xff]
        %v248 = vld [vmem:[#allocation3] sm:$0xff]
        %v249 = vmin.f32 %v247, %v239
        %250 = vmin.xlane.f32.xlu0 %v249
        %v251 = vpop.xlane.xlu0 %250
        %vm252 = vcmp.eq.f32.partialorder %v247, %v251
        %vm253 = vcmp.eq.f32.partialorder %v239, %v251
        %v254 = vsel %vm252, %v248, 1e+09
        %v255 = vsel %vm253, %v246, 1e+09
        %v256 = vmin.f32 %v254, %v255
        %257 = vmin.xlane.f32.xlu0 %v256
        %v258 = vpop.xlane.xlu0 %257
        %vm259 = vcmp.eq.f32.partialorder %v248, %v258
        %vm260 = vcmp.eq.f32.partialorder %v246, %v258
        %v261 = vsel %vm259, inf, %v247
        %v262 = vsel %vm260, inf, %v239
        %v263 = vmin.f32 %v261, %v262
        %264 = vmin.xlane.f32.xlu0 %v263
        %v265 = vpop.xlane.xlu0 %264
        %vm266 = vcmp.eq.f32.partialorder %v261, %v265
        %vm267 = vcmp.eq.f32.partialorder %v262, %v265
        %v268 = vsel %vm266, %v248, 1e+09
        %v269 = vsel %vm267, %v246, 1e+09
        %v270 = vmin.f32 %v268, %v269
        %271 = vmin.xlane.f32.xlu0 %v270
        %v272 = vpop.xlane.xlu0 %271
        %vm273 = vcmp.eq.f32.partialorder %v248, %v272
        %vm274 = vcmp.eq.f32.partialorder %v246, %v272
        %v275 = vsel %vm273, inf, %v261
        %v276 = vsel %vm274, inf, %v262
        %v277 = vmin.f32 %v275, %v276
        %278 = vmin.xlane.f32.xlu0 %v277
        %v279 = vpop.xlane.xlu0 %278
        %vm280 = vcmp.eq.f32.partialorder %v275, %v279
        %vm281 = vcmp.eq.f32.partialorder %v276, %v279
        %v282 = vsel %vm280, %v248, 1e+09
        %v283 = vsel %vm281, %v246, 1e+09
        %v284 = vmin.f32 %v282, %v283
        %285 = vmin.xlane.f32.xlu0 %v284
        %v286 = vpop.xlane.xlu0 %285
        %vm287 = vcmp.eq.f32.partialorder %v248, %v286
        %vm288 = vcmp.eq.f32.partialorder %v246, %v286
        %v289 = vsel %vm287, inf, %v275
        %v290 = vsel %vm288, inf, %v276
        %v291 = vmin.f32 %v289, %v290
        %292 = vmin.xlane.f32.xlu0 %v291
        %v293 = vpop.xlane.xlu0 %292
        %vm294 = vcmp.eq.f32.partialorder %v289, %v293
        %vm295 = vcmp.eq.f32.partialorder %v290, %v293
        %v296 = vsel %vm294, %v248, 1e+09
        %v297 = vsel %vm295, %v246, 1e+09
        %v298 = vmin.f32 %v296, %v297
        %299 = vmin.xlane.f32.xlu0 %v298
        %v300 = vpop.xlane.xlu0 %299
        %vm301 = vcmp.eq.f32.partialorder %v248, %v300
        %vm302 = vcmp.eq.f32.partialorder %v246, %v300
        %v303 = vsel %vm301, inf, %v289
        %v304 = vsel %vm302, inf, %v290
        %v305 = vmin.f32 %v303, %v304
        %306 = vmin.xlane.f32.xlu0 %v305
        %v307 = vpop.xlane.xlu0 %306
        %vm308 = vcmp.eq.f32.partialorder %v303, %v307
        %vm309 = vcmp.eq.f32.partialorder %v304, %v307
        %v310 = vsel %vm308, %v248, 1e+09
        %v311 = vsel %vm309, %v246, 1e+09
        %v312 = vmin.f32 %v310, %v311
        %313 = vmin.xlane.f32.xlu0 %v312
        %v314 = vpop.xlane.xlu0 %313
        %vm315 = vcmp.eq.f32.partialorder %v248, %v314
        %vm316 = vcmp.eq.f32.partialorder %v246, %v314
        %v317 = vsel %vm315, inf, %v303
        %v318 = vsel %vm316, inf, %v304
        %v319 = vmin.f32 %v317, %v318
        %320 = vmin.xlane.f32.xlu0 %v319
        %v321 = vpop.xlane.xlu0 %320
        %vm322 = vcmp.eq.f32.partialorder %v317, %v321
        %vm323 = vcmp.eq.f32.partialorder %v318, %v321
        %v324 = vsel %vm322, %v248, 1e+09
        %v325 = vsel %vm323, %v246, 1e+09
        %v326 = vmin.f32 %v324, %v325
        %327 = vmin.xlane.f32.xlu0 %v326
        %v328 = vpop.xlane.xlu0 %327
        %vm329 = vcmp.eq.f32.partialorder %v248, %v328
        %vm330 = vcmp.eq.f32.partialorder %v246, %v328
        %v331 = vsel %vm329, inf, %v317
        %v332 = vsel %vm330, inf, %v318
        %v333 = vmin.f32 %v331, %v332
        %334 = vmin.xlane.f32.xlu0 %v333
        %v335 = vpop.xlane.xlu0 %334
        %vm336 = vcmp.eq.f32.partialorder %v331, %v335
        %vm337 = vcmp.eq.f32.partialorder %v332, %v335
        %v338 = vsel %vm336, %v248, 1e+09
        %v339 = vsel %vm337, %v246, 1e+09
        %v340 = vmin.f32 %v338, %v339
        %341 = vmin.xlane.f32.xlu0 %v340
        %v342 = vpop.xlane.xlu0 %341
        %vm343 = vcmp.eq.f32.partialorder %v248, %v342
        %vm344 = vcmp.eq.f32.partialorder %v246, %v342
        %v345 = vsel %vm343, inf, %v331
        %v346 = vsel %vm344, inf, %v332
        %v347 = vmin.f32 %v345, %v346
        %348 = vmin.xlane.f32.xlu0 %v347
        %v349 = vpop.xlane.xlu0 %348
        %vm350 = vcmp.eq.f32.partialorder %v345, %v349
        %vm351 = vcmp.eq.f32.partialorder %v346, %v349
        %v352 = vsel %vm350, %v248, 1e+09
        %v353 = vsel %vm351, %v246, 1e+09
        %v354 = vmin.f32 %v352, %v353
        %355 = vmin.xlane.f32.xlu0 %v354
        %v356 = vpop.xlane.xlu0 %355
        %vm357 = vcmask 7168
        %v358 = vsel %vm357, %v251, %v265
        %vm359 = vcmask 15360
        %v360 = vsel %vm359, %v358, %v279
        %vm361 = vcmask 23552
        %v362 = vsel %vm361, %v360, %v293
        %vm363 = vcmask 31744
        %v364 = vsel %vm363, %v362, %v307
        %vm365 = vcmask 39936
        %v366 = vsel %vm365, %v364, %v321
        %vm367 = vcmask 48128
        %v368 = vsel %vm367, %v366, %v335
        %vm369 = vcmask 56320
        %v370 = vsel %vm369, %v368, %v349
        %vm371 = vcmask 64512
        %372 = vst.msk [vmem:[#allocation2] sm:$0xff] %vm371, %v370
        %v373 = vsel %vm357, %v258, %v272
        %v374 = vsel %vm359, %v373, %v286
        %v375 = vsel %vm361, %v374, %v300
        %v376 = vsel %vm363, %v375, %v314
        %v377 = vsel %vm365, %v376, %v328
        %v378 = vsel %vm367, %v377, %v342
        %v379 = vsel %vm369, %v378, %v356
        %380 = vst.msk [vmem:[#allocation3] sm:$0xff] %vm371, %v379
        // Predicated region
        $region33: #{tpu_custom_call.1} parent=27 // pred_check
          %p381 = pneg %p199
        $region34: #{tpu_custom_call.1} parent=27 // pred_check_branch
          %383 = sbr.rel (%p381) target = $region36
        $region35: #{tpu_custom_call.1} parent=27 // pred_region
          %v384 = vld [vmem:[#allocation3] sm:$0xff]
          %v385 = vcvt.f32.s32.to.zero.pseudo %v384
          %386 = vst.msk [vmem:[%s184] sm:$0xff] %vm371, %v385
        $region36: #{tpu_custom_call.1} parent=27 // pred_fallthru
          _
        %s387 = sand.u32 %s101, 1
        %s388 = scalar_lea.sflag [#allocation5], %s387
        %s389 = sand.u32 %s101, 1
        %s390 = smul.addr %s389, 8
        %s391 = scalar_lea.vmem [#allocation4], %s390
        // Predicated region
        $region37: #{tpu_custom_call.1} parent=27 // pred_check
          %p392 = pneg %p111
        $region38: #{tpu_custom_call.1} parent=27 // pred_check_branch
          %394 = sbr.rel (%p392) target = $region40
        $region39: #{tpu_custom_call.1} parent=27 // pred_region
          %s396 = ssub.s32 128, 128
          %397 = vsyncadd %s388, %s396
          %s398 = sadd.s32 %s22, %s21
          %s399 = smul.addr %s398, 128
          %s400 = scalar_lea.hbm %s2, %s399
          %s402 = sshll.u32 %s391, 4
          %s403 = int_to_ptr.vmem [resolvable:$true] %s402
          %405 = dma.vmem_to_hbm [thread:$0]  %s403, 128, %s400, %s388
        $region40: #{tpu_custom_call.1} parent=27 // pred_fallthru
          _
      $region28: #{tpu_custom_call.1} parent=5 // pred_fallthru
        _
      %p406 = scmp.le.s32.totalorder 2, %s11
      // Predicated region
      $region41: #{tpu_custom_call.1} parent=5 // pred_check
        %p407 = pneg %p406
      $region42: #{tpu_custom_call.1} parent=5 // pred_check_branch
        %409 = sbr.rel (%p407) target = $region44
      $region43: #{tpu_custom_call.1} parent=5 // pred_region
        %s410 = ssub.s32 %s11, 2
        // Predicated region
        $region45: #{tpu_custom_call.1} parent=43 // pred_check
          %p411 = pneg %p117
        $region46: #{tpu_custom_call.1} parent=43 // pred_check_branch
          %413 = sbr.rel (%p411) target = $region48
        $region47: #{tpu_custom_call.1} parent=43 // pred_region
          %s414 = sand.u32 %s102, 1
          %s415 = scalar_lea.sflag [#allocation5], %s414
          %s416 = sand.u32 %s102, 1
          %s417 = smul.addr %s416, 8
          %s418 = scalar_lea.vmem [#allocation4], %s417
          %419 = dma.done %s415, 128
        $region48: #{tpu_custom_call.1} parent=43 // pred_fallthru
          _
      $region44: #{tpu_custom_call.1} parent=5 // pred_fallthru
        _
    $region6: #{tpu_custom_call.1} parent=1 // loop_footer
      %s15 = sadd.s32 1, %s11
    $region7: #{tpu_custom_call.1} parent=1 // loop_footer_branch
      %10 = sbr.rel target = $region3
    $region8: #{tpu_custom_call.1} parent=1 // loop_exit
      _
    %420 = vsyncpa [#allocation5], 1
    %s421 = scalar_lea.sflag [#allocation5], 1
    %422 = vsyncpa %s421, 1

</llo_original>
